<compile_context>
chip_gen: v6e
topology: v6e:2x2x1
jax: 0.10.0
libtpu: 0.0.40
codegen_flags: <defaults>
</compile_context>

<pallas_src>
import functools

import jax
import jax.numpy as jnp
from jax.experimental import pallas as pl
from jax.experimental.pallas import tpu as pltpu

LENGTH_SCALE = 0.1
EXACT_TOL = 1e-6          # torch code: cdist(...) < 1e-6  (on the distance)
EXACT_TOL_SQ = EXACT_TOL * EXACT_TOL
_MAX_TB = 8               # max batch elements folded into one grid step


def persistence_kernel(data_ref, icoords_ref, tcoords_ref, out_ref, *,
                       target_var_idx):
    """One grid step handles `tb` batch elements.

    data_ref    : (tb, 1, N_in, V_in)  last context timestep (picked by index_map)
    icoords_ref : (tb, N_in, 2)        input coordinates
    tcoords_ref : (tb, N_out, 2)       target coordinates
    out_ref     : (tb, n_samples, N_out, time_predict)  replicated forecast
    """
    n_in = icoords_ref.shape[1]

    # Target coords: natural layout, target points stay on sublanes.
    tx = tcoords_ref[:, :, 0:1].astype(jnp.float32)            # (tb, N_out, 1)
    ty = tcoords_ref[:, :, 1:2].astype(jnp.float32)            # (tb, N_out, 1)

    # Input coords / values: flip so input points sit on the lane axis
    # (tiny in-kernel XLU transposes replace the former wrapper-side
    #  transpose/concat HLOs).
    ic = jnp.transpose(icoords_ref[...].astype(jnp.float32), (0, 2, 1))   # (tb, 2, N_in)
    ix = ic[:, 0:1, :]                                          # (tb, 1, N_in)
    iy = ic[:, 1:2, :]                                          # (tb, 1, N_in)
    dv = jnp.transpose(data_ref[:, 0, :, :].astype(jnp.float32), (0, 2, 1))  # (tb, V_in, N_in)
    vals = dv[:, target_var_idx:target_var_idx + 1, :]          # (tb, 1, N_in)

    # Pairwise squared distances: targets on sublanes, inputs on lanes.
    dx = tx - ix                                                # (tb, N_out, N_in)
    dy = ty - iy
    sq = dx * dx + dy * dy

    # --- RBF interpolation (matches _rbf_interpolation) ---
    # sum(w * v) / (sum(w) + eps)
    w = jnp.exp(sq * (-1.0 / (2.0 * LENGTH_SCALE * LENGTH_SCALE)))
    wsum = jnp.sum(w, axis=-1, keepdims=True) + 1e-8            # (tb, N_out, 1)
    num = jnp.sum(w * vals, axis=-1, keepdims=True)             # (tb, N_out, 1)
    rbf_val = num * pl.reciprocal(wsum, approx=False)

    # --- exact-match override: first input point with distance < tol ---
    # (first-match semantics kept so duplicate input coords behave like torch)
    mask = sq < EXACT_TOL_SQ
    idx = jax.lax.broadcasted_iota(jnp.int32, sq.shape, dimension=2)
    first = jnp.min(jnp.where(mask, idx, n_in), axis=-1, keepdims=True)  # (tb, N_out, 1)
    one_hot = (idx == first).astype(jnp.float32)
    exact_val = jnp.sum(one_hot * vals, axis=-1, keepdims=True)          # (tb, N_out, 1)
    has_match = first < n_in

    interp = jnp.where(has_match, exact_val, rbf_val)           # (tb, N_out, 1)

    # Persistence broadcast fused into the store:
    # (tb, N_out, 1) -> (tb, n_samples, N_out, time_predict).
    out_ref[...] = jnp.broadcast_to(interp[:, None, :, :],
                                    out_ref.shape).astype(out_ref.dtype)


def dummy_model_forward(input_data, input_coords, target_coords,
                        target_var_idx, time_predict, n_samples=10):
    """Pallas equivalent of DummyModel.forward.

    input_data:    (B, T_in, N_in, V_in)
    input_coords:  (B, N_in, 2)
    target_coords: (B, N_out, 2)
    returns:       (B, n_samples, N_out, time_predict) float32
    """
    B, T_in, N_in, V_in = input_data.shape
    N_out = target_coords.shape[1]

    # Batch elements per grid step.  Cap at cdiv(B, 2) so v7x's two
    # TensorCores both get at least one step; also force tb | B so no padded
    # tail block reads stale data.
    tb = min(B, _MAX_TB)
    if B > 1:
        tb = min(tb, pl.cdiv(B, 2))
    while B % tb:
        tb -= 1
    grid = (B // tb,)

    kernel = functools.partial(persistence_kernel,
                               target_var_idx=target_var_idx)

    out = pl.pallas_call(
        kernel,
        out_shape=jax.ShapeDtypeStruct((B, n_samples, N_out, time_predict),
                                       jnp.float32),
        grid_spec=pl.GridSpec(
            grid=grid,
            in_specs=[
                # Last context timestep only, all variables (target var is a
                # static slice inside the kernel; last two block dims equal
                # full dims so no (8,128) tiling issue).
                pl.BlockSpec((tb, 1, N_in, V_in),
                             lambda b: (b, T_in - 1, 0, 0)),
                pl.BlockSpec((tb, N_in, 2), lambda b: (b, 0, 0)),
                pl.BlockSpec((tb, N_out, 2), lambda b: (b, 0, 0)),
            ],
            out_specs=pl.BlockSpec((tb, n_samples, N_out, time_predict),
                                   lambda b: (b, 0, 0, 0)),
        ),
        compiler_params=pltpu.CompilerParams(
            dimension_semantics=("parallel",)),
    )(input_data, input_coords, target_coords)
    return out


def reference_forward(input_data, input_coords, target_coords,
                      target_var_idx, time_predict, n_samples=10):
    """Pure-JAX reference mirroring the PyTorch semantics (sanity check)."""
    B, _, N_in, _ = input_data.shape
    N_out = target_coords.shape[1]
    vals = input_data[:, -1, :, target_var_idx]                     # (B, N_in)
    diff = target_coords[:, :, None, :] - input_coords[:, None, :, :]
    sq = jnp.sum(diff * diff, axis=-1)                              # (B, N_out, N_in)
    w = jnp.exp(-sq / (2.0 * LENGTH_SCALE * LENGTH_SCALE))
    wn = w / (jnp.sum(w, axis=-1, keepdims=True) + 1e-8)
    rbf = jnp.sum(wn * vals[:, None, :], axis=-1)                   # (B, N_out)
    mask = sq < EXACT_TOL_SQ
    idx = jnp.arange(N_in)[None, None, :]
    first = jnp.min(jnp.where(mask, idx, N_in), axis=-1)            # (B, N_out)
    exact = jnp.sum((idx == first[..., None]) * vals[:, None, :], axis=-1)
    out = jnp.where(first < N_in, exact, rbf)
    return jnp.broadcast_to(out[:, None, :, None],
                            (B, n_samples, N_out, time_predict))


if __name__ == "__main__":
    # Config equivalent to:
    #   DummyModel(input_variables=["u","v","p"], target_variable="v", time_predict=5)
    input_variables = ["u", "v", "p"]
    target_variable = "v"
    target_var_idx = input_variables.index(target_variable)   # = 1
    time_predict = 5
    n_samples = 10

    B, T_in, N_in, V_in, N_out = 2, 4, 10, len(input_variables), 12

    key = jax.random.PRNGKey(0)
    k1, k2, k3 = jax.random.split(key, 3)
    input_data = jax.random.normal(k1, (B, T_in, N_in, V_in), dtype=jnp.float32)
    input_coords = jax.random.uniform(k2, (B, N_in, 2), dtype=jnp.float32)
    target_coords = jax.random.uniform(k3, (B, N_out, 2), dtype=jnp.float32)
    # Make some target points coincide exactly with input points to exercise
    # the exact-match (persistence copy) branch.
    target_coords = target_coords.at[:, :4, :].set(input_coords[:, 2:6, :])

    fwd = jax.jit(functools.partial(dummy_model_forward,
                                    target_var_idx=target_var_idx,
                                    time_predict=time_predict,
                                    n_samples=n_samples))
    out = fwd(input_data, input_coords, target_coords)
    out = jax.block_until_ready(out)

    ref = reference_forward(input_data, input_coords, target_coords,
                            target_var_idx, time_predict, n_samples)
    assert out.shape == (B, n_samples, N_out, time_predict)
    assert jnp.allclose(out, ref, atol=1e-5, rtol=1e-5)

    print("KERNEL_OK")
</pallas_src>

<mosaic_0001>
module attributes {stable_mosaic.version = 11 : i64} {
  func.func @persistence_kernel(%arg0: i32, %arg1: memref<1x1x10x3xf32, #tpu.memory_space<vmem>>, %arg2: memref<1x10x2xf32, #tpu.memory_space<vmem>>, %arg3: memref<1x12x2xf32, #tpu.memory_space<vmem>>, %arg4: memref<1x10x12x5xf32, #tpu.memory_space<vmem>>) attributes {dimension_semantics = [#tpu.dimension_semantics<parallel>], iteration_bounds = array<i64: 2>, scalar_prefetch = 0 : i64, scratch_operands = 0 : i64, tpu.core_type = #tpu.core_type<tc>, window_params = [{transform_indices = @transform_0, window_bounds = array<i64: 1, 1, 10, 3>}, {transform_indices = @transform_1, window_bounds = array<i64: 1, 10, 2>}, {transform_indices = @transform_2, window_bounds = array<i64: 1, 12, 2>}, {transform_indices = @transform_3, window_bounds = array<i64: 1, 10, 12, 5>}]} {
    %c0 = arith.constant 0 : index
    %c0_0 = arith.constant 0 : index
    %c0_1 = arith.constant 0 : index
    %0 = vector.load %arg3[%c0, %c0_0, %c0_1] : memref<1x12x2xf32, #tpu.memory_space<vmem>>, vector<1x12x1xf32>
    %c0_2 = arith.constant 0 : index
    %c0_3 = arith.constant 0 : index
    %c1 = arith.constant 1 : index
    %1 = vector.load %arg3[%c0_2, %c0_3, %c1] : memref<1x12x2xf32, #tpu.memory_space<vmem>>, vector<1x12x1xf32>
    %c0_4 = arith.constant 0 : index
    %c0_5 = arith.constant 0 : index
    %c0_6 = arith.constant 0 : index
    %2 = vector.load %arg2[%c0_4, %c0_5, %c0_6] : memref<1x10x2xf32, #tpu.memory_space<vmem>>, vector<1x10x2xf32>
    %3 = tpu.transpose %2, [0, 2, 1] : vector<1x10x2xf32> -> vector<1x2x10xf32>
    %4 = vector.extract_strided_slice %3 {offsets = [0, 0, 0], sizes = [1, 1, 10], strides = [1, 1, 1]} : vector<1x2x10xf32> to vector<1x1x10xf32>
    %5 = vector.extract_strided_slice %3 {offsets = [0, 1, 0], sizes = [1, 1, 10], strides = [1, 1, 1]} : vector<1x2x10xf32> to vector<1x1x10xf32>
    %c0_7 = arith.constant 0 : index
    %c0_8 = arith.constant 0 : index
    %c0_9 = arith.constant 0 : index
    %c0_10 = arith.constant 0 : index
    %6 = vector.load %arg1[%c0_7, %c0_8, %c0_9, %c0_10] : memref<1x1x10x3xf32, #tpu.memory_space<vmem>>, vector<1x1x10x3xf32>
    %7 = vector.shape_cast %6 : vector<1x1x10x3xf32> to vector<1x10x3xf32>
    %8 = tpu.transpose %7, [0, 2, 1] : vector<1x10x3xf32> -> vector<1x3x10xf32>
    %9 = vector.extract_strided_slice %8 {offsets = [0, 1, 0], sizes = [1, 1, 10], strides = [1, 1, 1]} : vector<1x3x10xf32> to vector<1x1x10xf32>
    %10 = vector.broadcast %0 : vector<1x12x1xf32> to vector<1x12x10xf32>
    %11 = vector.broadcast %4 : vector<1x1x10xf32> to vector<1x12x10xf32>
    %12 = arith.subf %10, %11 : vector<1x12x10xf32>
    %13 = vector.broadcast %1 : vector<1x12x1xf32> to vector<1x12x10xf32>
    %14 = vector.broadcast %5 : vector<1x1x10xf32> to vector<1x12x10xf32>
    %15 = arith.subf %13, %14 : vector<1x12x10xf32>
    %16 = arith.mulf %12, %12 : vector<1x12x10xf32>
    %17 = arith.mulf %15, %15 : vector<1x12x10xf32>
    %18 = arith.addf %16, %17 : vector<1x12x10xf32>
    %cst = arith.constant -5.000000e+01 : f32
    %19 = vector.broadcast %cst : f32 to vector<1x12x10xf32>
    %20 = arith.mulf %18, %19 : vector<1x12x10xf32>
    %21 = math.exp %20 : vector<1x12x10xf32>
    %cst_11 = arith.constant dense<0.000000e+00> : vector<1x12xf32>
    %22 = vector.multi_reduction <add>, %21, %cst_11 [2] : vector<1x12x10xf32> to vector<1x12xf32>
    %23 = vector.shape_cast %22 : vector<1x12xf32> to vector<1x12x1xf32>
    %cst_12 = arith.constant 9.99999993E-9 : f32
    %24 = vector.broadcast %cst_12 : f32 to vector<1x12x1xf32>
    %25 = arith.addf %23, %24 : vector<1x12x1xf32>
    %26 = vector.broadcast %9 : vector<1x1x10xf32> to vector<1x12x10xf32>
    %27 = arith.mulf %21, %26 : vector<1x12x10xf32>
    %cst_13 = arith.constant dense<0.000000e+00> : vector<1x12xf32>
    %28 = vector.multi_reduction <add>, %27, %cst_13 [2] : vector<1x12x10xf32> to vector<1x12xf32>
    %29 = vector.shape_cast %28 : vector<1x12xf32> to vector<1x12x1xf32>
    %30 = tpu.reciprocal %25 : vector<1x12x1xf32> -> vector<1x12x1xf32>
    %31 = arith.mulf %29, %30 : vector<1x12x1xf32>
    %cst_14 = arith.constant 9.99999996E-13 : f32
    %32 = vector.broadcast %cst_14 : f32 to vector<1x12x10xf32>
    %33 = arith.cmpf olt, %18, %32 : vector<1x12x10xf32>
    %34 = tpu.iota {dimensions = array<i32: 2>} : vector<1x12x10xi32>
    %c10_i32 = arith.constant 10 : i32
    %35 = vector.broadcast %c10_i32 : i32 to vector<1x12x10xi32>
    %36 = arith.select %33, %34, %35 : vector<1x12x10xi1>, vector<1x12x10xi32>
    %cst_15 = arith.constant dense<2147483647> : vector<1x12xi32>
    %37 = vector.multi_reduction <minsi>, %36, %cst_15 [2] : vector<1x12x10xi32> to vector<1x12xi32>
    %38 = vector.shape_cast %37 : vector<1x12xi32> to vector<1x12x1xi32>
    %39 = vector.broadcast %38 : vector<1x12x1xi32> to vector<1x12x10xi32>
    %40 = arith.cmpi eq, %34, %39 : vector<1x12x10xi32>
    %41 = arith.extui %40 : vector<1x12x10xi1> to vector<1x12x10xi32>
    %42 = arith.sitofp %41 : vector<1x12x10xi32> to vector<1x12x10xf32>
    %43 = vector.broadcast %9 : vector<1x1x10xf32> to vector<1x12x10xf32>
    %44 = arith.mulf %42, %43 : vector<1x12x10xf32>
    %cst_16 = arith.constant dense<0.000000e+00> : vector<1x12xf32>
    %45 = vector.multi_reduction <add>, %44, %cst_16 [2] : vector<1x12x10xf32> to vector<1x12xf32>
    %46 = vector.shape_cast %45 : vector<1x12xf32> to vector<1x12x1xf32>
    %c10_i32_17 = arith.constant 10 : i32
    %47 = vector.broadcast %c10_i32_17 : i32 to vector<1x12x1xi32>
    %48 = arith.cmpi slt, %38, %47 : vector<1x12x1xi32>
    %49 = arith.select %48, %46, %31 : vector<1x12x1xi1>, vector<1x12x1xf32>
    %50 = vector.shape_cast %49 : vector<1x12x1xf32> to vector<1x1x12x1xf32>
    %51 = vector.shape_cast %50 : vector<1x1x12x1xf32> to vector<1x1x12x1xf32>
    %52 = vector.broadcast %51 : vector<1x1x12x1xf32> to vector<1x10x12x5xf32>
    %c0_18 = arith.constant 0 : index
    %c0_19 = arith.constant 0 : index
    %c0_20 = arith.constant 0 : index
    %c0_21 = arith.constant 0 : index
    %53 = vector.load %arg4[%c0_18, %c0_19, %c0_20, %c0_21] : memref<1x10x12x5xf32, #tpu.memory_space<vmem>>, vector<1x10x12x5xf32>
    tpu.vector_store %arg4[%c0_18, %c0_19, %c0_20, %c0_21], %52 {strides = array<i32>} : memref<1x10x12x5xf32, #tpu.memory_space<vmem>>, vector<1x10x12x5xf32>,
    return
  }
  func.func @transform_0(%arg0: i32) -> (i32, i32, i32, i32) {
    %c3_i32 = arith.constant 3 : i32
    %c0_i32 = arith.constant 0 : i32
    %c0_i32_0 = arith.constant 0 : i32
    %c0_i32_1 = arith.constant 0 : i32
    return %arg0, %c3_i32, %c0_i32, %c0_i32_0 : i32, i32, i32, i32
  }
  func.func @transform_1(%arg0: i32) -> (i32, i32, i32) {
    %c0_i32 = arith.constant 0 : i32
    %c0_i32_0 = arith.constant 0 : i32
    %c0_i32_1 = arith.constant 0 : i32
    return %arg0, %c0_i32, %c0_i32_0 : i32, i32, i32
  }
  func.func @transform_2(%arg0: i32) -> (i32, i32, i32) {
    %c0_i32 = arith.constant 0 : i32
    %c0_i32_0 = arith.constant 0 : i32
    %c0_i32_1 = arith.constant 0 : i32
    return %arg0, %c0_i32, %c0_i32_0 : i32, i32, i32
  }
  func.func @transform_3(%arg0: i32) -> (i32, i32, i32, i32) {
    %c0_i32 = arith.constant 0 : i32
    %c0_i32_0 = arith.constant 0 : i32
    %c0_i32_1 = arith.constant 0 : i32
    %c0_i32_2 = arith.constant 0 : i32
    return %arg0, %c0_i32, %c0_i32_0, %c0_i32_1 : i32, i32, i32, i32
  }
}

</mosaic_0001>

<llo_original>
// kernel: dummy_model_forward.1
$region0: #{dummy_model_forward.1}
  #allocation0 [shape = 'u32[]', space=smem, size = 0x4, offset = 0x4, fixed_abs, tag = 'smem constant byte address 0x4 - core index']
  #allocation1 [shape = 'u32[144,128]{1,0:T(1,128)}', space=vmem, size = 0x12000, scoped, tag = 'internal scratch']
  %s0 = inlined_call_operand.vmem [shape: f32[2,4,10,3], index: 0, kind: input, shape index: {}]
  %s1 = inlined_call_operand.vmem [shape: f32[2,10,2], index: 1, kind: input, shape index: {}]
  %s2 = inlined_call_operand.vmem [shape: f32[2,12,2], index: 2, kind: input, shape index: {}]
  %s3 = inlined_call_operand.vmem [shape: f32[2,10,12,5], index: 3, kind: output, shape index: {}]
  %s4 = sld [smem:[#allocation0]]
  $region45: #{dummy_model_forward.1} parent=0
    _
  %s6 = ssub.s32 1, %s4
  %s7 = scalar_select 0, %s6, %s4
  loop: start=0, step=1, limit=4
  $region2: #{dummy_model_forward.1} parent=0 // loop_pre_header
    _
  $region3: #{dummy_model_forward.1} parent=0 // loop_header
    %s9 = sphi 0, %s13
    %p10 = scmp.ge.s32.totalorder %s9, 4
    %s19 = sphi 0, %s21
    %s22 = sphi 0, %s19
    %s23 = sphi 0, %s22
    %s39 = sphi 0, %s23
    %s45 = sphi 0, %s47
    %s48 = sphi 0, %s45
    %s49 = sphi 0, %s48
    %s65 = sphi 0, %s49
    %s71 = sphi 0, %s73
    %s74 = sphi 0, %s71
    %s75 = sphi 0, %s74
    %s91 = sphi 0, %s75
    %s97 = sphi 0, %s99
    %s100 = sphi 0, %s97
    %s101 = sphi 0, %s100
    %s117 = sphi 0, %s101
  $region4: #{dummy_model_forward.1} parent=0 // loop_header_branch
    %12 = sbr.rel (%p10) target = $region8
  $region5: #{dummy_model_forward.1} parent=0 // loop_body
    %s14 = ssub.s32 %s9, 1
    %s15 = ssub.s32 %s9, 2
    %s16 = sadd.s32 %s9, 1
    %s17 = ssub.s32 %s9, %s16
    %p18 = scmp.eq.s32.totalorder %s17, 0
    %s20 = sadd.s32 %s19, 1
    %s21 = scalar_select %p18, %s19, %s20
    %p24 = pneg %p18
    %p25 = scmp.eq.s32.totalorder %s9, 1
    %p26 = por %p24, %p25
    %p27 = scmp.ne.s32.totalorder %s19, %s22
    %p28 = scmp.eq.s32.totalorder %s9, 0
    %p29 = por %p27, %p28
    %p30 = scmp.ne.s32.totalorder %s19, %s22
    %p31 = scmp.eq.s32.totalorder %s14, 1
    %p32 = por %p30, %p31
    %p33 = scmp.ne.s32.totalorder %s22, %s23
    %p34 = scmp.eq.s32.totalorder %s14, 0
    %p35 = por %p33, %p34
    %p36 = scmp.ne.s32.totalorder %s22, %s23
    %p37 = scmp.eq.s32.totalorder %s15, 1
    %p38 = por %p36, %p37
    %p40 = scmp.ne.s32.totalorder %s23, %s39
    %p41 = scmp.eq.s32.totalorder %s15, 0
    %p42 = por %p40, %p41
    %s43 = ssub.s32 %s9, %s16
    %p44 = scmp.eq.s32.totalorder %s43, 0
    %s46 = sadd.s32 %s45, 1
    %s47 = scalar_select %p44, %s45, %s46
    %p50 = pneg %p44
    %p51 = scmp.eq.s32.totalorder %s9, 1
    %p52 = por %p50, %p51
    %p53 = scmp.ne.s32.totalorder %s45, %s48
    %p54 = scmp.eq.s32.totalorder %s9, 0
    %p55 = por %p53, %p54
    %p56 = scmp.ne.s32.totalorder %s45, %s48
    %p57 = scmp.eq.s32.totalorder %s14, 1
    %p58 = por %p56, %p57
    %p59 = scmp.ne.s32.totalorder %s48, %s49
    %p60 = scmp.eq.s32.totalorder %s14, 0
    %p61 = por %p59, %p60
    %p62 = scmp.ne.s32.totalorder %s48, %s49
    %p63 = scmp.eq.s32.totalorder %s15, 1
    %p64 = por %p62, %p63
    %p66 = scmp.ne.s32.totalorder %s49, %s65
    %p67 = scmp.eq.s32.totalorder %s15, 0
    %p68 = por %p66, %p67
    %s69 = ssub.s32 %s9, %s16
    %p70 = scmp.eq.s32.totalorder %s69, 0
    %s72 = sadd.s32 %s71, 1
    %s73 = scalar_select %p70, %s71, %s72
    %p76 = pneg %p70
    %p77 = scmp.eq.s32.totalorder %s9, 1
    %p78 = por %p76, %p77
    %p79 = scmp.ne.s32.totalorder %s71, %s74
    %p80 = scmp.eq.s32.totalorder %s9, 0
    %p81 = por %p79, %p80
    %p82 = scmp.ne.s32.totalorder %s71, %s74
    %p83 = scmp.eq.s32.totalorder %s14, 1
    %p84 = por %p82, %p83
    %p85 = scmp.ne.s32.totalorder %s74, %s75
    %p86 = scmp.eq.s32.totalorder %s14, 0
    %p87 = por %p85, %p86
    %p88 = scmp.ne.s32.totalorder %s74, %s75
    %p89 = scmp.eq.s32.totalorder %s15, 1
    %p90 = por %p88, %p89
    %p92 = scmp.ne.s32.totalorder %s75, %s91
    %p93 = scmp.eq.s32.totalorder %s15, 0
    %p94 = por %p92, %p93
    %s95 = ssub.s32 %s9, %s16
    %p96 = scmp.eq.s32.totalorder %s95, 0
    %s98 = sadd.s32 %s97, 1
    %s99 = scalar_select %p96, %s97, %s98
    %p102 = pneg %p96
    %p103 = scmp.eq.s32.totalorder %s9, 1
    %p104 = por %p102, %p103
    %p105 = scmp.ne.s32.totalorder %s97, %s100
    %p106 = scmp.eq.s32.totalorder %s9, 0
    %p107 = por %p105, %p106
    %p108 = scmp.ne.s32.totalorder %s97, %s100
    %p109 = scmp.eq.s32.totalorder %s14, 1
    %p110 = por %p108, %p109
    %p111 = scmp.ne.s32.totalorder %s100, %s101
    %p112 = scmp.eq.s32.totalorder %s14, 0
    %p113 = por %p111, %p112
    %p114 = scmp.ne.s32.totalorder %s100, %s101
    %p115 = scmp.eq.s32.totalorder %s15, 1
    %p116 = por %p114, %p115
    %p118 = scmp.ne.s32.totalorder %s101, %s117
    %p119 = scmp.eq.s32.totalorder %s15, 0
    %p120 = por %p118, %p119
    %p121 = scmp.le.s32.totalorder 1, %s9
    %p122 = scmp.lt.s32.totalorder %s9, 3
    %p123 = pnand %p121, %p122
    %p124 = pneg %p123
    // Predicated region
    $region9: #{dummy_model_forward.1} parent=5 // pred_check
      _
    $region10: #{dummy_model_forward.1} parent=5 // pred_check_branch
      %126 = sbr.rel (%p123) target = $region12
    $region11: #{dummy_model_forward.1} parent=5 // pred_region
      %s127 = ssub.s32 %s9, 1
    $region12: #{dummy_model_forward.1} parent=5 // pred_fallthru
      _
    %p128 = scmp.lt.s32.totalorder %s9, 2
    // Predicated region
    $region13: #{dummy_model_forward.1} parent=5 // pred_check
      %p129 = pneg %p128
    $region14: #{dummy_model_forward.1} parent=5 // pred_check_branch
      %131 = sbr.rel (%p129) target = $region16
    $region15: #{dummy_model_forward.1} parent=5 // pred_region
      // Predicated region
      $region17: #{dummy_model_forward.1} parent=15 // pred_check
        %p132 = pneg %p29
      $region18: #{dummy_model_forward.1} parent=15 // pred_check_branch
        %134 = sbr.rel (%p132) target = $region20
      $region19: #{dummy_model_forward.1} parent=15 // pred_region
        %p135 = scmp.lt.s32.totalorder %s9, 1
        %s136 = scalar_select %p135, %s9, 1
        %s137 = smul.addr %s136, 8
        %s138 = sadd.s32 6, %s137
        %s139 = smul.addr %s138, 8
        %s140 = scalar_lea.vmem %s0, %s139
      $region20: #{dummy_model_forward.1} parent=15 // pred_fallthru
        _
      // Predicated region
      $region21: #{dummy_model_forward.1} parent=15 // pred_check
        %p141 = pneg %p55
      $region22: #{dummy_model_forward.1} parent=15 // pred_check_branch
        %143 = sbr.rel (%p141) target = $region24
      $region23: #{dummy_model_forward.1} parent=15 // pred_region
        %p144 = scmp.lt.s32.totalorder %s9, 1
        %s145 = scalar_select %p144, %s9, 1
        %s146 = smul.addr %s145, 2
        %s147 = smul.addr %s146, 8
        %s148 = scalar_lea.vmem %s1, %s147
      $region24: #{dummy_model_forward.1} parent=15 // pred_fallthru
        _
      // Predicated region
      $region25: #{dummy_model_forward.1} parent=15 // pred_check
        %p149 = pneg %p81
      $region26: #{dummy_model_forward.1} parent=15 // pred_check_branch
        %151 = sbr.rel (%p149) target = $region28
      $region27: #{dummy_model_forward.1} parent=15 // pred_region
        %p152 = scmp.lt.s32.totalorder %s9, 1
        %s153 = scalar_select %p152, %s9, 1
        %s154 = smul.addr %s153, 2
        %s155 = smul.addr %s154, 8
        %s156 = scalar_lea.vmem %s2, %s155
      $region28: #{dummy_model_forward.1} parent=15 // pred_fallthru
        _
    $region16: #{dummy_model_forward.1} parent=5 // pred_fallthru
      _
    %p157 = scmp.le.s32.totalorder 1, %s9
    %p158 = scmp.lt.s32.totalorder %s9, 3
    %p159 = pnand %p157, %p158
    %p160 = pneg %p159
    // Predicated region
    $region29: #{dummy_model_forward.1} parent=5 // pred_check
      _
    $region30: #{dummy_model_forward.1} parent=5 // pred_check_branch
      %162 = sbr.rel (%p159) target = $region32
    $region31: #{dummy_model_forward.1} parent=5 // pred_region
      %s163 = ssub.s32 %s9, 1
      %p164 = scmp.lt.s32.totalorder %s14, 1
      %s165 = scalar_select %p164, %s14, 1
      %s166 = smul.addr %s165, 8
      %s167 = sadd.s32 6, %s166
      %s168 = smul.addr %s167, 8
      %s169 = scalar_lea.vmem %s0, %s168
      %p170 = pneg %p35
      %p171 = pneg %p32
      %p172 = scmp.lt.s32.totalorder %s14, 1
      %s173 = scalar_select %p172, %s14, 1
      %s174 = smul.addr %s173, 2
      %s175 = smul.addr %s174, 8
      %s176 = scalar_lea.vmem %s1, %s175
      %p177 = pneg %p61
      %p178 = pneg %p58
      %p179 = scmp.lt.s32.totalorder %s14, 1
      %s180 = scalar_select %p179, %s14, 1
      %s181 = smul.addr %s180, 2
      %s182 = smul.addr %s181, 8
      %s183 = scalar_lea.vmem %s2, %s182
      %p184 = pneg %p87
      %p185 = pneg %p84
      %p186 = pneg %p113
      %p187 = pneg %p110
      %p188 = scmp.lt.s32.totalorder %s14, 1
      %s189 = scalar_select %p188, %s14, 1
      %s190 = smul.addr %s189, 20
      %s191 = smul.addr %s190, 8
      %s192 = scalar_lea.vmem %s3, %s191
      %p193 = scmp.lt.s32.totalorder %s14, 1
      %s194 = scalar_select %p193, %s14, 1
      %s195 = smul.addr %s194, 8
      %s196 = sadd.s32 6, %s195
      %s197 = smul.addr %s196, 8
      %s198 = scalar_lea.vmem %s0, %s197
      %p199 = scmp.lt.s32.totalorder %s14, 1
      %s200 = scalar_select %p199, %s14, 1
      %s201 = smul.addr %s200, 2
      %s202 = smul.addr %s201, 8
      %s203 = scalar_lea.vmem %s1, %s202
      %p204 = scmp.lt.s32.totalorder %s14, 1
      %s205 = scalar_select %p204, %s14, 1
      %s206 = smul.addr %s205, 2
      %s207 = smul.addr %s206, 8
      %s208 = scalar_lea.vmem %s2, %s207
      %p209 = scmp.lt.s32.totalorder %s14, 1
      %s210 = scalar_select %p209, %s14, 1
      %s211 = smul.addr %s210, 20
      %s212 = smul.addr %s211, 8
      %s213 = scalar_lea.vmem %s3, %s212
      %v214 = vld [vmem:[%s208] sm:$0xff]
      %v215 = vld [vmem:[%s208 + $0x8] sm:$0xf]
      %v216 = vld [vmem:[%s203] sm:$0xff]
      %v217 = vld [vmem:[%s203 + $0x8] sm:$0x3]
      %218 = vxpose.xlu0.b32.start [1/16] %v216, 128
      %219 = vxpose.xlu0.b32.cont [2/16] %v217, 128
      %220 = vxpose.xlu0.b32.cont [3/16] 0.0, 128
      %221 = vxpose.xlu0.b32.cont [4/16] 0.0, 128
      %222 = vxpose.xlu0.b32.cont [5/16] 0.0, 128
      %223 = vxpose.xlu0.b32.cont [6/16] 0.0, 128
      %224 = vxpose.xlu0.b32.cont [7/16] 0.0, 128
      %225 = vxpose.xlu0.b32.cont [8/16] 0.0, 128
      %226 = vxpose.xlu0.b32.cont [9/16] 0.0, 128
      %227 = vxpose.xlu0.b32.cont [10/16] 0.0, 128
      %228 = vxpose.xlu0.b32.cont [11/16] 0.0, 128
      %229 = vxpose.xlu0.b32.cont [12/16] 0.0, 128
      %230 = vxpose.xlu0.b32.cont [13/16] 0.0, 128
      %231 = vxpose.xlu0.b32.cont [14/16] 0.0, 128
      %232 = vxpose.xlu0.b32.cont [15/16] 0.0, 128
      %233 = vxpose.xlu0.b32.end [16/16] 0.0, 128
      %v234 = vpop.trf.xlu0
      %v235 = vpop.trf.xlu0
      %v236 = vpop.trf.xlu0
      %v237 = vpop.trf.xlu0
      %v238 = vpop.trf.xlu0
      %v239 = vpop.trf.xlu0
      %v240 = vpop.trf.xlu0
      %v241 = vpop.trf.xlu0
      %v242 = vpop.trf.xlu0
      %v243 = vpop.trf.xlu0
      %v244 = vpop.trf.xlu0
      %v245 = vpop.trf.xlu0
      %v246 = vpop.trf.xlu0
      %v247 = vpop.trf.xlu0
      %v248 = vpop.trf.xlu0
      %v249 = vpop.trf.xlu0
      %v250 = vld [vmem:[%s198] sm:$0xff]
      %v251 = vld [vmem:[%s198 + $0x8] sm:$0x3]
      %252 = vxpose.xlu0.b32.start [1/16] %v250, 128
      %253 = vxpose.xlu0.b32.cont [2/16] %v251, 128
      %254 = vxpose.xlu0.b32.cont [3/16] 0.0, 128
      %255 = vxpose.xlu0.b32.cont [4/16] 0.0, 128
      %256 = vxpose.xlu0.b32.cont [5/16] 0.0, 128
      %257 = vxpose.xlu0.b32.cont [6/16] 0.0, 128
      %258 = vxpose.xlu0.b32.cont [7/16] 0.0, 128
      %259 = vxpose.xlu0.b32.cont [8/16] 0.0, 128
      %260 = vxpose.xlu0.b32.cont [9/16] 0.0, 128
      %261 = vxpose.xlu0.b32.cont [10/16] 0.0, 128
      %262 = vxpose.xlu0.b32.cont [11/16] 0.0, 128
      %263 = vxpose.xlu0.b32.cont [12/16] 0.0, 128
      %264 = vxpose.xlu0.b32.cont [13/16] 0.0, 128
      %265 = vxpose.xlu0.b32.cont [14/16] 0.0, 128
      %266 = vxpose.xlu0.b32.cont [15/16] 0.0, 128
      %267 = vxpose.xlu0.b32.end [16/16] 0.0, 128
      %v268 = vpop.trf.xlu0
      %v269 = vpop.trf.xlu0
      %v270 = vpop.trf.xlu0
      %v271 = vpop.trf.xlu0
      %v272 = vpop.trf.xlu0
      %v273 = vpop.trf.xlu0
      %v274 = vpop.trf.xlu0
      %v275 = vpop.trf.xlu0
      %v276 = vpop.trf.xlu0
      %v277 = vpop.trf.xlu0
      %v278 = vpop.trf.xlu0
      %v279 = vpop.trf.xlu0
      %v280 = vpop.trf.xlu0
      %v281 = vpop.trf.xlu0
      %v282 = vpop.trf.xlu0
      %v283 = vpop.trf.xlu0
      %285 = vset.pattern.permute.xlu0 0
      %286 = vperm.xlu0 %285, %v214
      %v287 = vpop.permute.xlu0 %286
      %290 = vset.pattern.permute.xlu0 0
      %291 = vperm.xlu0 %290, %v215
      %v292 = vpop.permute.xlu0 %291
      %v294 = vlaneseq
      %v295 = vshrl.u32 %v294, 7
      %v296 = vsub.s32 0, %v295
      %v297 = vrot.slane %v234, %v296
      %v298 = vsub.f32 %v287, %v297
      %v299 = vsub.f32 %v292, %v297
      %300 = vset.pattern.permute.xlu0 1
      %301 = vperm.xlu0 %300, %v214
      %v302 = vpop.permute.xlu0 %301
      %304 = vset.pattern.permute.xlu0 1
      %305 = vperm.xlu0 %304, %v215
      %v306 = vpop.permute.xlu0 %305
      %v308 = vlaneseq
      %v309 = vshrl.u32 %v308, 7
      %v310 = vsub.s32 1, %v309
      %v311 = vrot.slane %v234, %v310
      %v312 = vsub.f32 %v302, %v311
      %v313 = vsub.f32 %v306, %v311
      %v314 = vmul.f32 %v298, %v298
      %v315 = vmul.f32 %v299, %v299
      %v316 = vmul.f32 %v312, %v312
      %v317 = vmul.f32 %v313, %v313
      %v318 = vadd.f32 %v314, %v316
      %v319 = vadd.f32 %v315, %v317
      %v320 = vmul.f32 %v318, -50.0
      %v321 = vmul.f32 %v319, -50.0
      %v322 = vmul.f32 %v320, 1.442695
      %v323 = vpow.pop %v322
      %v324 = vmul.f32 %v321, 1.442695
      %v325 = vpow.pop %v324
      %vm326 = vcmask 80896
      %v327 = vsel %vm326, %v323, 0.0
      %328 = vadd.xlane.f32.xlu0 %v327
      %v329 = vpop.xlane.xlu0 %328
      %vm330 = vcmask 76800
      %v331 = vsel %vm330, %v325, 0.0
      %332 = vadd.xlane.f32.xlu0 %v331
      %v333 = vpop.xlane.xlu0 %332
      %v334 = vadd.f32 %v329, 1e-08
      %v335 = vadd.f32 %v333, 1e-08
      %v336 = vlaneseq
      %v337 = vshrl.u32 %v336, 7
      %v338 = vsub.s32 1, %v337
      %v339 = vrot.slane %v268, %v338
      %v340 = vmul.f32 %v323, %v339
      %v341 = vmul.f32 %v325, %v339
      %v342 = vsel %vm326, %v340, 0.0
      %343 = vadd.xlane.f32.xlu0 %v342
      %v344 = vpop.xlane.xlu0 %343
      %v345 = vsel %vm330, %v341, 0.0
      %346 = vadd.xlane.f32.xlu0 %v345
      %v347 = vpop.xlane.xlu0 %346
      %v348 = vrcp.pop %v334
      %v349 = vrcp.pop %v335
      %v350 = vmul.f32 %v344, %v348
      %v351 = vmul.f32 %v347, %v349
      %vm352 = vcmp.lt.f32.partialorder %v318, 1e-12
      %vm353 = vcmp.lt.f32.partialorder %v319, 1e-12
      %v354 = vlaneseq
      %v355 = vand.u32 %v354, 127
      %v356 = vsel %vm352, %v355, 10
      %v357 = vsel %vm353, %v355, 10
      %v358 = vsel %vm326, %v356, 2147483647
      %v359 = vand.u32 %v358, 65535
      %v360 = vshra.s32 %v358, 16
      %v361 = vcvt.s32.f32 %v359
      %v362 = vcvt.s32.f32 %v360
      %363 = vmin.xlane.f32.xlu0 %v362
      %v364 = vpop.xlane.xlu0 %363
      %vm365 = vcmp.eq.f32.partialorder %v362, %v364
      %v366 = vsel %vm365, %v361, inf
      %367 = vmin.xlane.f32.xlu0 %v366
      %v368 = vpop.xlane.xlu0 %367
      %v369 = vcvt.f32.s32 %v368
      %v370 = vcvt.f32.s32 %v364
      %v371 = vshll.u32 %v370, 16
      %v372 = vadd.s32 %v371, %v369
      %v373 = vsel %vm330, %v357, 2147483647
      %v374 = vand.u32 %v373, 65535
      %v375 = vshra.s32 %v373, 16
      %v376 = vcvt.s32.f32 %v374
      %v377 = vcvt.s32.f32 %v375
      %378 = vmin.xlane.f32.xlu0 %v377
      %v379 = vpop.xlane.xlu0 %378
      %vm380 = vcmp.eq.f32.partialorder %v377, %v379
      %v381 = vsel %vm380, %v376, inf
      %382 = vmin.xlane.f32.xlu0 %v381
      %v383 = vpop.xlane.xlu0 %382
      %v384 = vcvt.f32.s32 %v383
      %v385 = vcvt.f32.s32 %v379
      %v386 = vshll.u32 %v385, 16
      %v387 = vadd.s32 %v386, %v384
      %vm388 = vcmp.eq.s32.totalorder %v355, %v372
      %vm389 = vcmp.eq.s32.totalorder %v355, %v387
      %v390 = vsel %vm388, 1, 0
      %v391 = vsel %vm389, 1, 0
      %v392 = vcvt.s32.f32 %v390
      %v393 = vcvt.s32.f32 %v391
      %v394 = vmul.f32 %v392, %v339
      %v395 = vmul.f32 %v393, %v339
      %v396 = vsel %vm326, %v394, 0.0
      %397 = vadd.xlane.f32.xlu0 %v396
      %v398 = vpop.xlane.xlu0 %397
      %v399 = vsel %vm330, %v395, 0.0
      %400 = vadd.xlane.f32.xlu0 %v399
      %v401 = vpop.xlane.xlu0 %400
      %vm402 = vcmp.lt.s32.totalorder %v372, 10
      %vm403 = vcmp.lt.s32.totalorder %v387, 10
      %v404 = vsel %vm402, %v398, %v350
      %v405 = vsel %vm403, %v401, %v351
      %vm406 = vcmask 39936
      %407 = vst.msk [vmem:[%s213] sm:$0xff] %vm406, %v404
      %vm408 = vcmask 35840
      %409 = vst.msk [vmem:[%s213 + $0x8] sm:$0xf] %vm408, %v405
      %410 = vst.msk [vmem:[%s213 + $0x10] sm:$0xff] %vm406, %v404
      %411 = vst.msk [vmem:[%s213 + $0x18] sm:$0xf] %vm408, %v405
      %412 = vst.msk [vmem:[%s213 + $0x20] sm:$0xff] %vm406, %v404
      %413 = vst.msk [vmem:[%s213 + $0x28] sm:$0xf] %vm408, %v405
      %414 = vst.msk [vmem:[%s213 + $0x30] sm:$0xff] %vm406, %v404
      %415 = vst.msk [vmem:[%s213 + $0x38] sm:$0xf] %vm408, %v405
      %416 = vst.msk [vmem:[%s213 + $0x40] sm:$0xff] %vm406, %v404
      %417 = vst.msk [vmem:[%s213 + $0x48] sm:$0xf] %vm408, %v405
      %418 = vst.msk [vmem:[%s213 + $0x50] sm:$0xff] %vm406, %v404
      %419 = vst.msk [vmem:[%s213 + $0x58] sm:$0xf] %vm408, %v405
      %420 = vst.msk [vmem:[%s213 + $0x60] sm:$0xff] %vm406, %v404
      %421 = vst.msk [vmem:[%s213 + $0x68] sm:$0xf] %vm408, %v405
      %422 = vst.msk [vmem:[%s213 + $0x70] sm:$0xff] %vm406, %v404
      %423 = vst.msk [vmem:[%s213 + $0x78] sm:$0xf] %vm408, %v405
      %424 = vst.msk [vmem:[%s213 + $0x80] sm:$0xff] %vm406, %v404
      %425 = vst.msk [vmem:[%s213 + $0x88] sm:$0xf] %vm408, %v405
      %426 = vst.msk [vmem:[%s213 + $0x90] sm:$0xff] %vm406, %v404
      %427 = vst.msk [vmem:[%s213 + $0x98] sm:$0xf] %vm408, %v405
      %p428 = scmp.lt.s32.totalorder %s14, 1
      %s429 = scalar_select %p428, %s14, 1
      %s430 = smul.addr %s429, 20
      %s431 = smul.addr %s430, 8
      %s432 = scalar_lea.vmem %s3, %s431
      // Predicated region
      $region33: #{dummy_model_forward.1} parent=31 // pred_check
        %p433 = pneg %p110
      $region34: #{dummy_model_forward.1} parent=31 // pred_check_branch
        %435 = sbr.rel (%p433) target = $region36
      $region35: #{dummy_model_forward.1} parent=31 // pred_region
        _
      $region36: #{dummy_model_forward.1} parent=31 // pred_fallthru
        _
    $region32: #{dummy_model_forward.1} parent=5 // pred_fallthru
      _
    %p436 = scmp.le.s32.totalorder 2, %s9
    // Predicated region
    $region37: #{dummy_model_forward.1} parent=5 // pred_check
      %p437 = pneg %p436
    $region38: #{dummy_model_forward.1} parent=5 // pred_check_branch
      %439 = sbr.rel (%p437) target = $region40
    $region39: #{dummy_model_forward.1} parent=5 // pred_region
      %s440 = ssub.s32 %s9, 2
      // Predicated region
      $region41: #{dummy_model_forward.1} parent=39 // pred_check
        %p441 = pneg %p116
      $region42: #{dummy_model_forward.1} parent=39 // pred_check_branch
        %443 = sbr.rel (%p441) target = $region44
      $region43: #{dummy_model_forward.1} parent=39 // pred_region
        %p444 = scmp.lt.s32.totalorder %s15, 1
        %s445 = scalar_select %p444, %s15, 1
        %s446 = smul.addr %s445, 20
        %s447 = smul.addr %s446, 8
        %s448 = scalar_lea.vmem %s3, %s447
      $region44: #{dummy_model_forward.1} parent=39 // pred_fallthru
        _
    $region40: #{dummy_model_forward.1} parent=5 // pred_fallthru
      _
  $region6: #{dummy_model_forward.1} parent=0 // loop_footer
    %s13 = sadd.s32 1, %s9
  $region7: #{dummy_model_forward.1} parent=0 // loop_footer_branch
    %8 = sbr.rel target = $region3
  $region8: #{dummy_model_forward.1} parent=0 // loop_exit
    _

</llo_original>
